<compile_context>
chip_gen: v6e
topology: v6e:2x2x1
jax: 0.10.0
libtpu: 0.0.40
codegen_flags: <defaults>
</compile_context>

<pallas_src>
import math
import functools

import jax
import jax.numpy as jnp
from jax import lax
from jax.experimental import pallas as pl
from jax.experimental.pallas import tpu as pltpu


def _round_up(n, m):
    return ((n + m - 1) // m) * m


# ----------------------------- Pallas kernel --------------------------------

def _gn_conv_kernel(xs_ref, w_ref, p_ref, o_ref, *, K, stride, L_out, eps,
                    approx_gelu):
    # xs_ref: (NB, stride, C_in, L_phase)  stride-phase decomposition of x
    #         xs[nb, p, c, l] == x[nb, c, l*stride + p]   (zero past the end)
    # w_ref:  (TC, K*C_in)   conv weights, contraction ordered as k*C_in + c
    # p_ref:  (3, TC, 1)     [conv bias ; GN gamma ; GN beta] column vectors
    # o_ref:  (NB, TC, L_phase)
    NB = xs_ref.shape[0]
    L_phase = o_ref.shape[-1]

    # --- build the (K*C_in, NB*L_phase) stacked-tap block (contraction operand) ---
    # taps with the same lane shift o = k // stride are concatenated and rolled once.
    n_off = (K + stride - 1) // stride
    per_nb = []
    for nb in range(NB):
        blocks = []
        for o in range(n_off):
            phs = [xs_ref[nb, p] for p in range(stride) if o * stride + p < K]
            blk = phs[0] if len(phs) == 1 else jnp.concatenate(phs, axis=0)
            if o:
                # left-shift by o lanes; wrapped lanes land in the masked tail (>= L_out)
                blk = pltpu.roll(blk, shift=L_phase - o, axis=1)
            blocks.append(blk)
        per_nb.append(blocks[0] if len(blocks) == 1 else
                      jnp.concatenate(blocks, axis=0))
    taps = per_nb[0] if NB == 1 else jnp.concatenate(per_nb, axis=1)

    # --- Conv1d as ONE MXU matmul (contraction depth K*C_in) + bias ---
    y = jnp.dot(w_ref[...], taps, preferred_element_type=jnp.float32)
    y = y + p_ref[0]                                     # (TC, NB*L_phase)

    # --- GELU (exact erf by default, matching torch.nn.GELU) ---
    if approx_gelu:
        # tanh approximation uses the EUP slot; ~1e-3 off torch's exact GELU.
        c = math.sqrt(2.0 / math.pi)
        y = 0.5 * y * (1.0 + jnp.tanh(c * (y + 0.044715 * y * y * y)))
    else:
        y = 0.5 * y * (1.0 + lax.erf(y * (1.0 / math.sqrt(2.0))))

    # --- GroupNorm (num_groups == num_channels): per-(batch, channel) stats over the
    #     L_out valid lanes of each batch segment; one masked pass, var clamped >= 0 ---
    lane = lax.broadcasted_iota(jnp.int32, (1, L_phase), 1)
    valid = lane < L_out
    inv_n = 1.0 / L_out
    gamma = p_ref[1]
    beta = p_ref[2]
    for nb in range(NB):
        seg = y[:, nb * L_phase:(nb + 1) * L_phase]      # lane-aligned static slice
        segm = jnp.where(valid, seg, 0.0)
        mean = jnp.sum(segm, axis=1, keepdims=True) * inv_n
        ex2 = jnp.sum(segm * segm, axis=1, keepdims=True) * inv_n
        var = jnp.maximum(ex2 - mean * mean, 0.0)        # clamp one-pass cancellation
        y_hat = (seg - mean) * lax.rsqrt(var + eps)
        o_ref[nb, :, :] = (gamma * y_hat + beta).astype(o_ref.dtype)


# ------------------------------ Wrapper --------------------------------------

def group_norm_conv_layer(x, conv_w, conv_b, gn_w, gn_b, *, stride, eps=1e-5,
                          approx_gelu=False, crop_output=True):
    """x: (B, C_in, L).  conv_w: (C_out, C_in, K).  Returns (B, C_out, L_out)."""
    B, C_in, L = x.shape
    C_out, C_in_w, K = conv_w.shape
    assert C_in_w == C_in
    L_out = (L - K) // stride + 1
    assert L_out >= 1

    o_max = (K - 1) // stride                 # max intra-phase lane shift
    L_phase = _round_up(L_out + o_max, 128)   # lane-dense tile (multiple of 128)

    # --- channel tiling ---
    C_out_p = _round_up(C_out, 8)
    if C_out_p > 128:
        C_out_p = _round_up(C_out_p, 128)
        TC = 128
    else:
        TC = C_out_p
    J = C_out_p // TC
    # v7x megacore: guarantee >= 2 parallel grid steps when the problem allows it.
    if B * J == 1 and TC % 16 == 0:
        TC //= 2
        J = 2

    # --- batch packing: NB batch elements per grid step (lane-concatenated in kernel) ---
    x_isz = jnp.dtype(x.dtype).itemsize
    w_isz = jnp.dtype(conv_w.dtype).itemsize
    out_isz = x_isz
    per_b_bytes = (2 * stride * C_in * x_isz            # xs block (double-buffered)
                   + 2 * TC * out_isz                   # out block (double-buffered)
                   + (K * C_in + 3 * TC) * 4            # in-kernel f32 temporaries
                   ) * L_phase
    NB = 1
    for nb in range(1, min(B, 8) + 1):
        if B % nb:
            continue
        if B * J >= 2 and (B // nb) * J < 2:
            continue                                    # keep both v7x TCs busy
        if nb * per_b_bytes > (40 << 20):               # v7x-safe working-set target
            continue
        NB = nb
    G = B // NB
    # TODO(synk): for very long sequences where even NB=1/TC=8 exceeds the VMEM
    # budget, add an L-tile grid axis with a two-pass GroupNorm finalize.

    # --- stride-phase re-layout of x: static strided slices, native dtype, no C_in pad ---
    phases = []
    for p in range(stride):
        ph = x[:, :, p::stride][:, :, :L_phase]
        pad = L_phase - ph.shape[-1]
        if pad:
            ph = jnp.pad(ph, ((0, 0), (0, 0), (0, pad)))
        phases.append(ph)
    xs = jnp.stack(phases, axis=1)                      # (B, stride, C_in, L_phase)

    # --- conv weight as one (C_out_p, K*C_in) matrix, contraction ordered (k, c) ---
    w2 = jnp.transpose(conv_w, (0, 2, 1)).reshape(C_out, K * C_in)
    w2 = jnp.pad(w2, ((0, C_out_p - C_out), (0, 0)))

    # --- conv bias / GN gamma / GN beta stacked as one (3, C_out_p, 1) f32 block ---
    f32 = jnp.float32
    params = jnp.stack([
        jnp.pad(conv_b.astype(f32), (0, C_out_p - C_out)),
        jnp.pad(gn_w.astype(f32), (0, C_out_p - C_out)),
        jnp.pad(gn_b.astype(f32), (0, C_out_p - C_out)),
    ], axis=0).reshape(3, C_out_p, 1)

    kernel = functools.partial(_gn_conv_kernel, K=K, stride=stride,
                               L_out=L_out, eps=eps, approx_gelu=approx_gelu)

    # --- VMEM budget from the actual double-buffered blocks + temporary headroom ---
    blocks_bytes = 2 * (NB * stride * C_in * L_phase * x_isz
                        + TC * K * C_in * w_isz
                        + 3 * TC * 4
                        + NB * TC * L_phase * out_isz)
    temps_bytes = (K * C_in + 3 * TC) * NB * L_phase * 4
    vmem_limit = int(min(max(blocks_bytes + temps_bytes + (2 << 20), 8 << 20),
                         100 << 20))

    flops = 2 * B * C_out * C_in * K * L_out + 12 * B * C_out * L_out
    bytes_accessed = (xs.size * x_isz + w2.size * w_isz + params.size * 4
                      + B * C_out_p * L_phase * out_isz)
    cost = pl.CostEstimate(flops=int(flops),
                           transcendentals=int(2 * B * C_out * L_out),
                           bytes_accessed=int(bytes_accessed))

    out = pl.pallas_call(
        kernel,
        out_shape=jax.ShapeDtypeStruct((B, C_out_p, L_phase), x.dtype),
        grid_spec=pltpu.PrefetchScalarGridSpec(
            num_scalar_prefetch=0,
            grid=(G, J),
            in_specs=[
                pl.BlockSpec((NB, stride, C_in, L_phase), lambda g, j: (g, 0, 0, 0)),
                pl.BlockSpec((TC, K * C_in), lambda g, j: (j, 0)),
                pl.BlockSpec((3, TC, 1), lambda g, j: (0, j, 0)),
            ],
            out_specs=pl.BlockSpec((NB, TC, L_phase), lambda g, j: (g, j, 0)),
        ),
        compiler_params=pltpu.CompilerParams(
            dimension_semantics=("parallel", "parallel"),
            vmem_limit_bytes=vmem_limit,
        ),
        cost_estimate=cost,
    )(xs, w2, params)

    if crop_output:
        # NOTE: this crop is an extra HBM round-trip; consumers that can handle the
        # channel / lane padding should pass crop_output=False and slice lazily.
        return out[:, :C_out, :L_out]
    return out


# ------------------------------ Reference ------------------------------------

def _reference(x, conv_w, conv_b, gn_w, gn_b, *, stride, eps=1e-5):
    y = lax.conv_general_dilated(
        x, conv_w, window_strides=(stride,), padding="VALID",
        dimension_numbers=("NCH", "OIH", "NCH"))
    y = y + conv_b[None, :, None]
    y = 0.5 * y * (1.0 + lax.erf(y / jnp.sqrt(2.0)))
    mean = jnp.mean(y, axis=2, keepdims=True)
    var = jnp.mean((y - mean) ** 2, axis=2, keepdims=True)
    y = (y - mean) / jnp.sqrt(var + eps)
    return gn_w[None, :, None] * y + gn_b[None, :, None]


# -------------------------------- Main ----------------------------------------

if __name__ == "__main__":
    # Module config: Conv1d(in=4, out=8, kernel_size=3, stride=2, groups=1)
    # batch=4 so the batch-packing path (NB=2, grid=(2,1)) is exercised.
    B, C_in, L = 4, 4, 16
    C_out, K, stride = 8, 3, 2

    key = jax.random.PRNGKey(0)
    kx, kw, kb, kg, kbt = jax.random.split(key, 5)

    x = jax.random.normal(kx, (B, C_in, L), dtype=jnp.float32)
    conv_w = 0.1 * jax.random.normal(kw, (C_out, C_in, K), dtype=jnp.float32)
    conv_b = 0.1 * jax.random.normal(kb, (C_out,), dtype=jnp.float32)
    gn_w = 1.0 + 0.1 * jax.random.normal(kg, (C_out,), dtype=jnp.float32)
    gn_b = 0.1 * jax.random.normal(kbt, (C_out,), dtype=jnp.float32)

    out = group_norm_conv_layer(x, conv_w, conv_b, gn_w, gn_b, stride=stride)
    out = jax.block_until_ready(out)

    ref = _reference(x, conv_w, conv_b, gn_w, gn_b, stride=stride)
    assert out.shape == (B, C_out, (L - K) // stride + 1)
    assert jnp.allclose(out, ref, atol=1e-4, rtol=1e-4), (
        f"max abs err = {jnp.max(jnp.abs(out - ref))}")

    print("KERNEL_OK")
</pallas_src>

<mosaic_0001>
module attributes {stable_mosaic.version = 11 : i64} {
  func.func @_gn_conv_kernel(%arg0: i32, %arg1: i32, %arg2: memref<2x2x4x128xf32, #tpu.memory_space<vmem>>, %arg3: memref<8x12xf32, #tpu.memory_space<vmem>>, %arg4: memref<3x8x1xf32, #tpu.memory_space<vmem>>, %arg5: memref<2x8x128xf32, #tpu.memory_space<vmem>>) attributes {dimension_semantics = [#tpu.dimension_semantics<parallel>, #tpu.dimension_semantics<parallel>], iteration_bounds = array<i64: 2, 1>, scalar_prefetch = 0 : i64, scratch_operands = 0 : i64, tpu.core_type = #tpu.core_type<tc>, window_params = [{transform_indices = @transform_0, window_bounds = array<i64: 2, 2, 4, 128>}, {transform_indices = @transform_1, window_bounds = array<i64: 8, 12>}, {transform_indices = @transform_2, window_bounds = array<i64: 3, 8, 1>}, {transform_indices = @transform_3, window_bounds = array<i64: 2, 8, 128>}]} {
    %c0 = arith.constant 0 : index
    %c0_0 = arith.constant 0 : index
    %c0_1 = arith.constant 0 : index
    %c0_2 = arith.constant 0 : index
    %0 = vector.load %arg2[%c0, %c0_0, %c0_1, %c0_2] : memref<2x2x4x128xf32, #tpu.memory_space<vmem>>, vector<1x1x4x128xf32>
    %1 = vector.shape_cast %0 : vector<1x1x4x128xf32> to vector<4x128xf32>
    %c0_3 = arith.constant 0 : index
    %c1 = arith.constant 1 : index
    %c0_4 = arith.constant 0 : index
    %c0_5 = arith.constant 0 : index
    %2 = vector.load %arg2[%c0_3, %c1, %c0_4, %c0_5] : memref<2x2x4x128xf32, #tpu.memory_space<vmem>>, vector<1x1x4x128xf32>
    %3 = vector.shape_cast %2 : vector<1x1x4x128xf32> to vector<4x128xf32>
    %4 = tpu.concatenate %1, %3 in 0 : vector<4x128xf32>, vector<4x128xf32> -> vector<8x128xf32>
    %c0_6 = arith.constant 0 : index
    %c0_7 = arith.constant 0 : index
    %c0_8 = arith.constant 0 : index
    %c0_9 = arith.constant 0 : index
    %5 = vector.load %arg2[%c0_6, %c0_7, %c0_8, %c0_9] : memref<2x2x4x128xf32, #tpu.memory_space<vmem>>, vector<1x1x4x128xf32>
    %6 = vector.shape_cast %5 : vector<1x1x4x128xf32> to vector<4x128xf32>
    %c127_i32 = arith.constant 127 : i32
    %7 = tpu.dynamic_rotate %6 by %c127_i32 dim 1 : vector<4x128xf32>, i32 -> vector<4x128xf32>
    %8 = tpu.concatenate %4, %7 in 0 : vector<8x128xf32>, vector<4x128xf32> -> vector<12x128xf32>
    %c1_10 = arith.constant 1 : index
    %c0_11 = arith.constant 0 : index
    %c0_12 = arith.constant 0 : index
    %c0_13 = arith.constant 0 : index
    %9 = vector.load %arg2[%c1_10, %c0_11, %c0_12, %c0_13] : memref<2x2x4x128xf32, #tpu.memory_space<vmem>>, vector<1x1x4x128xf32>
    %10 = vector.shape_cast %9 : vector<1x1x4x128xf32> to vector<4x128xf32>
    %c1_14 = arith.constant 1 : index
    %c1_15 = arith.constant 1 : index
    %c0_16 = arith.constant 0 : index
    %c0_17 = arith.constant 0 : index
    %11 = vector.load %arg2[%c1_14, %c1_15, %c0_16, %c0_17] : memref<2x2x4x128xf32, #tpu.memory_space<vmem>>, vector<1x1x4x128xf32>
    %12 = vector.shape_cast %11 : vector<1x1x4x128xf32> to vector<4x128xf32>
    %13 = tpu.concatenate %10, %12 in 0 : vector<4x128xf32>, vector<4x128xf32> -> vector<8x128xf32>
    %c1_18 = arith.constant 1 : index
    %c0_19 = arith.constant 0 : index
    %c0_20 = arith.constant 0 : index
    %c0_21 = arith.constant 0 : index
    %14 = vector.load %arg2[%c1_18, %c0_19, %c0_20, %c0_21] : memref<2x2x4x128xf32, #tpu.memory_space<vmem>>, vector<1x1x4x128xf32>
    %15 = vector.shape_cast %14 : vector<1x1x4x128xf32> to vector<4x128xf32>
    %c127_i32_22 = arith.constant 127 : i32
    %16 = tpu.dynamic_rotate %15 by %c127_i32_22 dim 1 : vector<4x128xf32>, i32 -> vector<4x128xf32>
    %17 = tpu.concatenate %13, %16 in 0 : vector<8x128xf32>, vector<4x128xf32> -> vector<12x128xf32>
    %18 = tpu.concatenate %8, %17 in 1 : vector<12x128xf32>, vector<12x128xf32> -> vector<12x256xf32>
    %c0_23 = arith.constant 0 : index
    %c0_24 = arith.constant 0 : index
    %19 = vector.load %arg3[%c0_23, %c0_24] : memref<8x12xf32, #tpu.memory_space<vmem>>, vector<8x12xf32>
    %cst = arith.constant dense<0.000000e+00> : vector<8x256xf32>
    %20 = tpu.matmul %19, %18, %cst {dimension_numbers = #tpu.dot_dimension_numbers<[1], [0], [0], [1], [0, 0, 1, 1], [], []>} : vector<8x12xf32>, vector<12x256xf32>, vector<8x256xf32> -> vector<8x256xf32>
    %c0_25 = arith.constant 0 : index
    %c0_26 = arith.constant 0 : index
    %c0_27 = arith.constant 0 : index
    %21 = vector.load %arg4[%c0_25, %c0_26, %c0_27] : memref<3x8x1xf32, #tpu.memory_space<vmem>>, vector<1x8x1xf32>
    %22 = vector.shape_cast %21 : vector<1x8x1xf32> to vector<8x1xf32>
    %23 = vector.broadcast %22 : vector<8x1xf32> to vector<8x256xf32>
    %24 = arith.addf %20, %23 : vector<8x256xf32>
    %cst_28 = arith.constant 5.000000e-01 : f32
    %25 = vector.broadcast %cst_28 : f32 to vector<8x256xf32>
    %26 = arith.mulf %25, %24 : vector<8x256xf32>
    %cst_29 = arith.constant 0.707106769 : f32
    %27 = vector.broadcast %cst_29 : f32 to vector<8x256xf32>
    %28 = arith.mulf %24, %27 : vector<8x256xf32>
    %29 = math.erf %28 : vector<8x256xf32>
    %cst_30 = arith.constant 1.000000e+00 : f32
    %30 = vector.broadcast %cst_30 : f32 to vector<8x256xf32>
    %31 = arith.addf %30, %29 : vector<8x256xf32>
    %32 = arith.mulf %26, %31 : vector<8x256xf32>
    %33 = tpu.iota {dimensions = array<i32: 1>} : vector<1x128xi32>
    %c7_i32 = arith.constant 7 : i32
    %34 = vector.broadcast %c7_i32 : i32 to vector<1x128xi32>
    %35 = arith.cmpi slt, %33, %34 : vector<1x128xi32>
    %c1_31 = arith.constant 1 : index
    %c0_32 = arith.constant 0 : index
    %c0_33 = arith.constant 0 : index
    %36 = vector.load %arg4[%c1_31, %c0_32, %c0_33] : memref<3x8x1xf32, #tpu.memory_space<vmem>>, vector<1x8x1xf32>
    %37 = vector.shape_cast %36 : vector<1x8x1xf32> to vector<8x1xf32>
    %c2 = arith.constant 2 : index
    %c0_34 = arith.constant 0 : index
    %c0_35 = arith.constant 0 : index
    %38 = vector.load %arg4[%c2, %c0_34, %c0_35] : memref<3x8x1xf32, #tpu.memory_space<vmem>>, vector<1x8x1xf32>
    %39 = vector.shape_cast %38 : vector<1x8x1xf32> to vector<8x1xf32>
    %40 = vector.extract_strided_slice %32 {offsets = [0, 0], sizes = [8, 128], strides = [1, 1]} : vector<8x256xf32> to vector<8x128xf32>
    %cst_36 = arith.constant 0.000000e+00 : f32
    %41 = vector.shape_cast %35 : vector<1x128xi1> to vector<1x128xi1>
    %42 = vector.broadcast %41 : vector<1x128xi1> to vector<8x128xi1>
    %43 = vector.broadcast %cst_36 : f32 to vector<8x128xf32>
    %44 = arith.select %42, %40, %43 : vector<8x128xi1>, vector<8x128xf32>
    %cst_37 = arith.constant dense<0.000000e+00> : vector<8xf32>
    %45 = vector.multi_reduction <add>, %44, %cst_37 [1] : vector<8x128xf32> to vector<8xf32>
    %46 = vector.shape_cast %45 : vector<8xf32> to vector<8x1xf32>
    %cst_38 = arith.constant 0.142857149 : f32
    %47 = vector.broadcast %cst_38 : f32 to vector<8x1xf32>
    %48 = arith.mulf %46, %47 : vector<8x1xf32>
    %49 = arith.mulf %44, %44 : vector<8x128xf32>
    %cst_39 = arith.constant dense<0.000000e+00> : vector<8xf32>
    %50 = vector.multi_reduction <add>, %49, %cst_39 [1] : vector<8x128xf32> to vector<8xf32>
    %51 = vector.shape_cast %50 : vector<8xf32> to vector<8x1xf32>
    %cst_40 = arith.constant 0.142857149 : f32
    %52 = vector.broadcast %cst_40 : f32 to vector<8x1xf32>
    %53 = arith.mulf %51, %52 : vector<8x1xf32>
    %54 = arith.mulf %48, %48 : vector<8x1xf32>
    %55 = arith.subf %53, %54 : vector<8x1xf32>
    %cst_41 = arith.constant 0.000000e+00 : f32
    %56 = vector.broadcast %cst_41 : f32 to vector<8x1xf32>
    %57 = arith.maximumf %55, %56 : vector<8x1xf32>
    %58 = vector.broadcast %48 : vector<8x1xf32> to vector<8x128xf32>
    %59 = arith.subf %40, %58 : vector<8x128xf32>
    %cst_42 = arith.constant 9.99999974E-6 : f32
    %60 = vector.broadcast %cst_42 : f32 to vector<8x1xf32>
    %61 = arith.addf %57, %60 : vector<8x1xf32>
    %62 = math.rsqrt %61 : vector<8x1xf32>
    %63 = vector.broadcast %62 : vector<8x1xf32> to vector<8x128xf32>
    %64 = arith.mulf %59, %63 : vector<8x128xf32>
    %65 = vector.broadcast %37 : vector<8x1xf32> to vector<8x128xf32>
    %66 = arith.mulf %65, %64 : vector<8x128xf32>
    %67 = vector.broadcast %39 : vector<8x1xf32> to vector<8x128xf32>
    %68 = arith.addf %66, %67 : vector<8x128xf32>
    %c0_43 = arith.constant 0 : index
    %c0_44 = arith.constant 0 : index
    %c0_45 = arith.constant 0 : index
    %69 = vector.load %arg5[%c0_43, %c0_44, %c0_45] : memref<2x8x128xf32, #tpu.memory_space<vmem>>, vector<1x8x128xf32>
    %70 = vector.shape_cast %69 : vector<1x8x128xf32> to vector<8x128xf32>
    %71 = vector.shape_cast %68 : vector<8x128xf32> to vector<1x8x128xf32>
    tpu.vector_store %arg5[%c0_43, %c0_44, %c0_45], %71 {strides = array<i32>} : memref<2x8x128xf32, #tpu.memory_space<vmem>>, vector<1x8x128xf32>,
    %72 = vector.extract_strided_slice %32 {offsets = [0, 128], sizes = [8, 128], strides = [1, 1]} : vector<8x256xf32> to vector<8x128xf32>
    %cst_46 = arith.constant 0.000000e+00 : f32
    %73 = vector.shape_cast %35 : vector<1x128xi1> to vector<1x128xi1>
    %74 = vector.broadcast %73 : vector<1x128xi1> to vector<8x128xi1>
    %75 = vector.broadcast %cst_46 : f32 to vector<8x128xf32>
    %76 = arith.select %74, %72, %75 : vector<8x128xi1>, vector<8x128xf32>
    %cst_47 = arith.constant dense<0.000000e+00> : vector<8xf32>
    %77 = vector.multi_reduction <add>, %76, %cst_47 [1] : vector<8x128xf32> to vector<8xf32>
    %78 = vector.shape_cast %77 : vector<8xf32> to vector<8x1xf32>
    %cst_48 = arith.constant 0.142857149 : f32
    %79 = vector.broadcast %cst_48 : f32 to vector<8x1xf32>
    %80 = arith.mulf %78, %79 : vector<8x1xf32>
    %81 = arith.mulf %76, %76 : vector<8x128xf32>
    %cst_49 = arith.constant dense<0.000000e+00> : vector<8xf32>
    %82 = vector.multi_reduction <add>, %81, %cst_49 [1] : vector<8x128xf32> to vector<8xf32>
    %83 = vector.shape_cast %82 : vector<8xf32> to vector<8x1xf32>
    %cst_50 = arith.constant 0.142857149 : f32
    %84 = vector.broadcast %cst_50 : f32 to vector<8x1xf32>
    %85 = arith.mulf %83, %84 : vector<8x1xf32>
    %86 = arith.mulf %80, %80 : vector<8x1xf32>
    %87 = arith.subf %85, %86 : vector<8x1xf32>
    %cst_51 = arith.constant 0.000000e+00 : f32
    %88 = vector.broadcast %cst_51 : f32 to vector<8x1xf32>
    %89 = arith.maximumf %87, %88 : vector<8x1xf32>
    %90 = vector.broadcast %80 : vector<8x1xf32> to vector<8x128xf32>
    %91 = arith.subf %72, %90 : vector<8x128xf32>
    %cst_52 = arith.constant 9.99999974E-6 : f32
    %92 = vector.broadcast %cst_52 : f32 to vector<8x1xf32>
    %93 = arith.addf %89, %92 : vector<8x1xf32>
    %94 = math.rsqrt %93 : vector<8x1xf32>
    %95 = vector.broadcast %94 : vector<8x1xf32> to vector<8x128xf32>
    %96 = arith.mulf %91, %95 : vector<8x128xf32>
    %97 = vector.broadcast %37 : vector<8x1xf32> to vector<8x128xf32>
    %98 = arith.mulf %97, %96 : vector<8x128xf32>
    %99 = vector.broadcast %39 : vector<8x1xf32> to vector<8x128xf32>
    %100 = arith.addf %98, %99 : vector<8x128xf32>
    %c1_53 = arith.constant 1 : index
    %c0_54 = arith.constant 0 : index
    %c0_55 = arith.constant 0 : index
    %101 = vector.load %arg5[%c1_53, %c0_54, %c0_55] : memref<2x8x128xf32, #tpu.memory_space<vmem>>, vector<1x8x128xf32>
    %102 = vector.shape_cast %101 : vector<1x8x128xf32> to vector<8x128xf32>
    %103 = vector.shape_cast %100 : vector<8x128xf32> to vector<1x8x128xf32>
    tpu.vector_store %arg5[%c1_53, %c0_54, %c0_55], %103 {strides = array<i32>} : memref<2x8x128xf32, #tpu.memory_space<vmem>>, vector<1x8x128xf32>,
    return
  }
  func.func @transform_0(%arg0: i32, %arg1: i32) -> (i32, i32, i32, i32) {
    %c0_i32 = arith.constant 0 : i32
    %c0_i32_0 = arith.constant 0 : i32
    %c0_i32_1 = arith.constant 0 : i32
    %c0_i32_2 = arith.constant 0 : i32
    return %arg0, %c0_i32, %c0_i32_0, %c0_i32_1 : i32, i32, i32, i32
  }
  func.func @transform_1(%arg0: i32, %arg1: i32) -> (i32, i32) {
    %c0_i32 = arith.constant 0 : i32
    %c0_i32_0 = arith.constant 0 : i32
    return %arg1, %c0_i32 : i32, i32
  }
  func.func @transform_2(%arg0: i32, %arg1: i32) -> (i32, i32, i32) {
    %c0_i32 = arith.constant 0 : i32
    %c0_i32_0 = arith.constant 0 : i32
    %c0_i32_1 = arith.constant 0 : i32
    return %c0_i32, %arg1, %c0_i32_0 : i32, i32, i32
  }
  func.func @transform_3(%arg0: i32, %arg1: i32) -> (i32, i32, i32) {
    %c0_i32 = arith.constant 0 : i32
    %c0_i32_0 = arith.constant 0 : i32
    return %arg0, %arg1, %c0_i32 : i32, i32, i32
  }
}

</mosaic_0001>

<llo_original>
// kernel: tpu_custom_call.1
$region0: #{tpu_custom_call.1}
  #allocation0 [shape = 'u32[]', space=smem, size = 0x4, offset = 0x4, fixed_abs, tag = 'smem constant byte address 0x4 - core index']
  #allocation1 [shape = 'u32[144,128]{1,0:T(1,128)}', space=vmem, size = 0x12000, scoped, tag = 'internal scratch']
  %s0 = inlined_call_operand.hbm [shape: f32[4,2,4,128], index: 0, kind: input, shape index: {}]
  %s1 = inlined_call_operand.vmem [shape: f32[8,12], index: 1, kind: input, shape index: {}]
  %s2 = inlined_call_operand.vmem [shape: f32[3,8,1], index: 2, kind: input, shape index: {}]
  %s3 = inlined_call_operand.hbm [shape: f32[4,8,128], index: 3, kind: output, shape index: {}]
  %s4 = sld [smem:[#allocation0]]
  $region49: #{tpu_custom_call.1} parent=0
    _
  %s6 = ssub.s32 1, %s4
  %s7 = scalar_select 0, %s6, %s4
  $region1: #{tpu_custom_call.1} parent=0
    #allocation2 [shape = 'u8[16384]{0}', space=vmem, size = 0x4000, scoped, tag = 'input window, operand 0']
    #allocation3 [shape = 's32[2]{0}', space=sflag, size = 0x8, scoped, tag = 'scoped memory for tpu_custom_call.1']
    #allocation4 [shape = 's32[2]{0}', space=sflag, size = 0x8, scoped, tag = 'scoped memory for tpu_custom_call.1']
    #allocation5 [shape = 'u8[16384]{0}', space=vmem, size = 0x4000, scoped, tag = 'output window, operand 0']
    %8 = vsyncpa [#allocation3], 0
    %s9 = scalar_lea.sflag [#allocation3], 1
    %10 = vsyncpa %s9, 0
    %11 = vsyncpa [#allocation4], 0
    %s12 = scalar_lea.sflag [#allocation4], 1
    %13 = vsyncpa %s12, 0
    loop: start=0, step=1, limit=4
    $region2: #{tpu_custom_call.1} parent=1 // loop_pre_header
      _
    $region3: #{tpu_custom_call.1} parent=1 // loop_header
      %s15 = sphi 0, %s19
      %p16 = scmp.ge.s32.totalorder %s15, 4
      %s22 = sphi 0, %s34
      %s23 = sphi 0, %s30
      %s24 = sphi 0, %s22
      %s25 = sphi 0, %s23
      %s26 = sphi 0, %s24
      %s27 = sphi 0, %s25
      %s37 = sphi 0, %s39
      %s40 = sphi 0, %s37
      %s41 = sphi 0, %s40
      %s57 = sphi 0, %s41
      %s63 = sphi 0, %s65
      %s66 = sphi 0, %s63
      %s67 = sphi 0, %s66
      %s83 = sphi 0, %s67
      %s89 = sphi 0, %s91
      %s92 = sphi 0, %s89
      %s93 = sphi 0, %s92
      %s109 = sphi 0, %s93
      %s117 = sphi 0, %s119
      %s120 = sphi 0, %s117
      %s121 = sphi 0, %s120
      %s137 = sphi 0, %s121
    $region4: #{tpu_custom_call.1} parent=1 // loop_header_branch
      %18 = sbr.rel (%p16) target = $region8
    $region5: #{tpu_custom_call.1} parent=1 // loop_body
      %s20 = ssub.s32 %s15, 1
      %s21 = ssub.s32 %s15, 2
      %s28 = sadd.s32 1, %s23
      %p29 = scmp.ge.s32.totalorder %s28, 1
      %s30 = scalar_select %p29, 0, %s28
      %s31 = sadd.s32 1, %s22
      %s32 = scalar_select %p29, %s31, %s22
      %p33 = scmp.ge.s32.totalorder %s32, 2
      %s34 = scalar_select %p33, 0, %s32
      %s35 = ssub.s32 %s22, %s34
      %p36 = scmp.eq.s32.totalorder %s35, 0
      %s38 = sadd.s32 %s37, 1
      %s39 = scalar_select %p36, %s37, %s38
      %p42 = pneg %p36
      %p43 = scmp.eq.s32.totalorder %s15, 1
      %p44 = por %p42, %p43
      %p45 = scmp.ne.s32.totalorder %s37, %s40
      %p46 = scmp.eq.s32.totalorder %s15, 0
      %p47 = por %p45, %p46
      %p48 = scmp.ne.s32.totalorder %s37, %s40
      %p49 = scmp.eq.s32.totalorder %s20, 1
      %p50 = por %p48, %p49
      %p51 = scmp.ne.s32.totalorder %s40, %s41
      %p52 = scmp.eq.s32.totalorder %s20, 0
      %p53 = por %p51, %p52
      %p54 = scmp.ne.s32.totalorder %s40, %s41
      %p55 = scmp.eq.s32.totalorder %s21, 1
      %p56 = por %p54, %p55
      %p58 = scmp.ne.s32.totalorder %s41, %s57
      %p59 = scmp.eq.s32.totalorder %s21, 0
      %p60 = por %p58, %p59
      %s61 = ssub.s32 %s23, %s30
      %p62 = scmp.eq.s32.totalorder %s61, 0
      %s64 = sadd.s32 %s63, 1
      %s65 = scalar_select %p62, %s63, %s64
      %p68 = pneg %p62
      %p69 = scmp.eq.s32.totalorder %s15, 1
      %p70 = por %p68, %p69
      %p71 = scmp.ne.s32.totalorder %s63, %s66
      %p72 = scmp.eq.s32.totalorder %s15, 0
      %p73 = por %p71, %p72
      %p74 = scmp.ne.s32.totalorder %s63, %s66
      %p75 = scmp.eq.s32.totalorder %s20, 1
      %p76 = por %p74, %p75
      %p77 = scmp.ne.s32.totalorder %s66, %s67
      %p78 = scmp.eq.s32.totalorder %s20, 0
      %p79 = por %p77, %p78
      %p80 = scmp.ne.s32.totalorder %s66, %s67
      %p81 = scmp.eq.s32.totalorder %s21, 1
      %p82 = por %p80, %p81
      %p84 = scmp.ne.s32.totalorder %s67, %s83
      %p85 = scmp.eq.s32.totalorder %s21, 0
      %p86 = por %p84, %p85
      %s87 = ssub.s32 %s23, %s30
      %p88 = scmp.eq.s32.totalorder %s87, 0
      %s90 = sadd.s32 %s89, 1
      %s91 = scalar_select %p88, %s89, %s90
      %p94 = pneg %p88
      %p95 = scmp.eq.s32.totalorder %s15, 1
      %p96 = por %p94, %p95
      %p97 = scmp.ne.s32.totalorder %s89, %s92
      %p98 = scmp.eq.s32.totalorder %s15, 0
      %p99 = por %p97, %p98
      %p100 = scmp.ne.s32.totalorder %s89, %s92
      %p101 = scmp.eq.s32.totalorder %s20, 1
      %p102 = por %p100, %p101
      %p103 = scmp.ne.s32.totalorder %s92, %s93
      %p104 = scmp.eq.s32.totalorder %s20, 0
      %p105 = por %p103, %p104
      %p106 = scmp.ne.s32.totalorder %s92, %s93
      %p107 = scmp.eq.s32.totalorder %s21, 1
      %p108 = por %p106, %p107
      %p110 = scmp.ne.s32.totalorder %s93, %s109
      %p111 = scmp.eq.s32.totalorder %s21, 0
      %p112 = por %p110, %p111
      %s113 = ssub.s32 %s22, %s34
      %s114 = ssub.s32 %s23, %s30
      %s115 = sor.u32 %s113, %s114
      %p116 = scmp.eq.s32.totalorder %s115, 0
      %s118 = sadd.s32 %s117, 1
      %s119 = scalar_select %p116, %s117, %s118
      %p122 = pneg %p116
      %p123 = scmp.eq.s32.totalorder %s15, 1
      %p124 = por %p122, %p123
      %p125 = scmp.ne.s32.totalorder %s117, %s120
      %p126 = scmp.eq.s32.totalorder %s15, 0
      %p127 = por %p125, %p126
      %p128 = scmp.ne.s32.totalorder %s117, %s120
      %p129 = scmp.eq.s32.totalorder %s20, 1
      %p130 = por %p128, %p129
      %p131 = scmp.ne.s32.totalorder %s120, %s121
      %p132 = scmp.eq.s32.totalorder %s20, 0
      %p133 = por %p131, %p132
      %p134 = scmp.ne.s32.totalorder %s120, %s121
      %p135 = scmp.eq.s32.totalorder %s21, 1
      %p136 = por %p134, %p135
      %p138 = scmp.ne.s32.totalorder %s121, %s137
      %p139 = scmp.eq.s32.totalorder %s21, 0
      %p140 = por %p138, %p139
      %p141 = scmp.le.s32.totalorder 1, %s15
      %p142 = scmp.lt.s32.totalorder %s15, 3
      %p143 = pnand %p141, %p142
      %p144 = pneg %p143
      // Predicated region
      $region9: #{tpu_custom_call.1} parent=5 // pred_check
        _
      $region10: #{tpu_custom_call.1} parent=5 // pred_check_branch
        %146 = sbr.rel (%p143) target = $region12
      $region11: #{tpu_custom_call.1} parent=5 // pred_region
        %s147 = ssub.s32 %s15, 1
        // Predicated region
        $region13: #{tpu_custom_call.1} parent=11 // pred_check
          %p148 = pneg %p79
        $region14: #{tpu_custom_call.1} parent=11 // pred_check_branch
          %150 = sbr.rel (%p148) target = $region16
        $region15: #{tpu_custom_call.1} parent=11 // pred_region
          %p151 = scmp.lt.s32.totalorder %s25, 0
          %s152 = scalar_select %p151, %s25, 0
          %s153 = smul.addr %s152, 8
          %s154 = scalar_lea.vmem %s1, %s153
        $region16: #{tpu_custom_call.1} parent=11 // pred_fallthru
          _
        // Predicated region
        $region17: #{tpu_custom_call.1} parent=11 // pred_check
          %p155 = pneg %p105
        $region18: #{tpu_custom_call.1} parent=11 // pred_check_branch
          %157 = sbr.rel (%p155) target = $region20
        $region19: #{tpu_custom_call.1} parent=11 // pred_region
          %p158 = scmp.lt.s32.totalorder %s25, 0
          %s159 = scalar_select %p158, %s25, 0
          %s160 = smul.addr %s159, 8
          %s161 = scalar_lea.vmem %s2, %s160
        $region20: #{tpu_custom_call.1} parent=11 // pred_fallthru
          _
      $region12: #{tpu_custom_call.1} parent=5 // pred_fallthru
        _
      %p162 = scmp.lt.s32.totalorder %s15, 2
      // Predicated region
      $region21: #{tpu_custom_call.1} parent=5 // pred_check
        %p163 = pneg %p162
      $region22: #{tpu_custom_call.1} parent=5 // pred_check_branch
        %165 = sbr.rel (%p163) target = $region24
      $region23: #{tpu_custom_call.1} parent=5 // pred_region
        // Predicated region
        $region25: #{tpu_custom_call.1} parent=23 // pred_check
          %p166 = pneg %p47
        $region26: #{tpu_custom_call.1} parent=23 // pred_check_branch
          %168 = sbr.rel (%p166) target = $region28
        $region27: #{tpu_custom_call.1} parent=23 // pred_region
          %s169 = sand.u32 %s37, 1
          %s170 = scalar_lea.sflag [#allocation3], %s169
          %s171 = sand.u32 %s37, 1
          %s172 = smul.addr %s171, 16
          %s173 = scalar_lea.vmem [#allocation2], %s172
          %s174 = smul.u32 2, %s22
          %s176 = ssub.s32 256, 256
          %177 = vsyncadd %s170, %s176
          %s178 = smul.addr %s174, 2
          %s179 = smul.addr %s178, 64
          %s180 = scalar_lea.hbm %s0, %s179
          %s181 = sshll.u32 %s173, 4
          %s182 = int_to_ptr.vmem [resolvable:$true] %s181
          %187 = dma.hbm_to_vmem [thread:$0]  %s180, 256, %s182, %s170, 64, 64, 4
        $region28: #{tpu_custom_call.1} parent=23 // pred_fallthru
          _
      $region24: #{tpu_custom_call.1} parent=5 // pred_fallthru
        _
      %p188 = scmp.le.s32.totalorder 1, %s15
      %p189 = scmp.lt.s32.totalorder %s15, 3
      %p190 = pnand %p188, %p189
      %p191 = pneg %p190
      // Predicated region
      $region29: #{tpu_custom_call.1} parent=5 // pred_check
        _
      $region30: #{tpu_custom_call.1} parent=5 // pred_check_branch
        %193 = sbr.rel (%p190) target = $region32
      $region31: #{tpu_custom_call.1} parent=5 // pred_region
        %s194 = ssub.s32 %s15, 1
        %s195 = sand.u32 %s40, 1
        %s196 = scalar_lea.sflag [#allocation3], %s195
        %s197 = sand.u32 %s40, 1
        %s198 = smul.addr %s197, 16
        %s199 = scalar_lea.vmem [#allocation2], %s198
        // Predicated region
        $region33: #{tpu_custom_call.1} parent=31 // pred_check
          %p200 = pneg %p53
        $region34: #{tpu_custom_call.1} parent=31 // pred_check_branch
          %202 = sbr.rel (%p200) target = $region36
        $region35: #{tpu_custom_call.1} parent=31 // pred_region
          %203 = dma.done %s196, 256
        $region36: #{tpu_custom_call.1} parent=31 // pred_fallthru
          _
        %s204 = sand.u32 %s40, 1
        %s205 = scalar_lea.sflag [#allocation3], %s204
        %s206 = sand.u32 %s40, 1
        %s207 = smul.addr %s206, 16
        %s208 = scalar_lea.vmem [#allocation2], %s207
        %p209 = pneg %p53
        %p210 = pneg %p50
        %p211 = scmp.lt.s32.totalorder %s25, 0
        %s212 = scalar_select %p211, %s25, 0
        %s213 = smul.addr %s212, 8
        %s214 = scalar_lea.vmem %s1, %s213
        %p215 = pneg %p79
        %p216 = pneg %p76
        %p217 = scmp.lt.s32.totalorder %s25, 0
        %s218 = scalar_select %p217, %s25, 0
        %s219 = smul.addr %s218, 8
        %s220 = scalar_lea.vmem %s2, %s219
        %p221 = pneg %p105
        %p222 = pneg %p102
        %p223 = pneg %p133
        %p224 = pneg %p130
        %s225 = sand.u32 %s120, 1
        %s226 = scalar_lea.sflag [#allocation4], %s225
        %s227 = sand.u32 %s120, 1
        %s228 = smul.addr %s227, 16
        %s229 = scalar_lea.vmem [#allocation5], %s228
        %s230 = smul.u32 2, %s24
        %p231 = scmp.lt.s32.totalorder %s25, 0
        %s232 = scalar_select %p231, %s25, 0
        %s233 = smul.addr %s232, 8
        %s234 = scalar_lea.vmem %s1, %s233
        %p235 = scmp.lt.s32.totalorder %s25, 0
        %s236 = scalar_select %p235, %s25, 0
        %s237 = smul.addr %s236, 8
        %s238 = scalar_lea.vmem %s2, %s237
        %s239 = smul.u32 2, %s24
        %v240 = vld [vmem:[%s199] sm:$0xf]
        %s241 = scalar_lea.vmem %s199, 4 [#allocation2]
        %v242 = vld [vmem:[%s241] sm:$0xf]
        %v244 = vrot.slane %v242, 4
        %vm246 = vcmask 1043456
        %v247 = vsel %vm246, %v240, %v244
        %248 = vrot.lane.b32.xlu0 %v240, 127
        %v249 = vpop.permute.xlu0 %248
        %s250 = scalar_lea.vmem %s199, 8 [#allocation2]
        %v251 = vld [vmem:[%s250] sm:$0xf]
        %s252 = scalar_lea.vmem %s199, 12 [#allocation2]
        %v253 = vld [vmem:[%s252] sm:$0xf]
        %v255 = vrot.slane %v253, 4
        %v257 = vsel %vm246, %v251, %v255
        %258 = vrot.lane.b32.xlu0 %v251, 127
        %v259 = vpop.permute.xlu0 %258
        %v260 = vld [vmem:[%s234] sm:$0xff]
        %v261 = vld [vmem:[%s238] sm:$0xff]
        %263 = vset.pattern.permute.xlu0 0
        %264 = vperm.xlu0 %263, %v261
        %v265 = vpop.permute.xlu0 %264
        %vm267 = vcmask 97280
        %v269 = vsel %vm267, %v260, 0
        %v272 = vsel %vm246, %v249, 0
        %v275 = vsel %vm246, %v259, 0
        %277 = vmatprep.subr.mxu0 0.0
        %278 = vmatpush1.msra.mxu0 0.0
        %279 = vmatprep.subr.mxu0 0.0
        %280 = vmatpush1.msra.mxu0 0.0
        %281 = vmatprep.subr.mxu0 0.0
        %282 = vmatpush1.msra.mxu0 0.0
        %283 = vmatprep.subr.mxu0 0.0
        %284 = vmatpush1.msra.mxu0 0.0
        %285 = vmatprep.subr.mxu0 0.0
        %286 = vmatpush1.msra.mxu0 0.0
        %287 = vmatprep.subr.mxu0 0.0
        %288 = vmatpush1.msra.mxu0 0.0
        %289 = vmatprep.subr.mxu0 0.0
        %290 = vmatpush1.msra.mxu0 0.0
        %291 = vmatprep.subr.mxu0 0.0
        %292 = vmatpush1.msra.mxu0 0.0
        %293 = vmatprep.subr.mxu0 0.0
        %294 = vmatpush1.msra.mxu0 0.0
        %295 = vmatprep.subr.mxu0 0.0
        %296 = vmatpush1.msra.mxu0 0.0
        %297 = vmatprep.subr.mxu0 0.0
        %298 = vmatpush1.msra.mxu0 0.0
        %299 = vmatprep.subr.mxu0 0.0
        %300 = vmatpush1.msra.mxu0 0.0
        %301 = vmatprep.subr.mxu0 0.0
        %302 = vmatpush1.msra.mxu0 0.0
        %303 = vmatprep.subr.mxu0 0.0
        %304 = vmatpush1.msra.mxu0 0.0
        %305 = vmatprep.subr.mxu0 %v275
        %306 = vmatpush1.msra.mxu0 %v272
        %307 = vmatprep.subr.mxu0 %v257
        %308 = vmatpush1.msra.mxu0 %v247
        %309 = vmatprep.subr.mxu0 0.0
        %310 = vmatpush2.msra.mxu0 0.0
        %311 = vmatprep.subr.mxu0 0.0
        %312 = vmatpush2.msra.mxu0 0.0
        %313 = vmatprep.subr.mxu0 0.0
        %314 = vmatpush2.msra.mxu0 0.0
        %315 = vmatprep.subr.mxu0 0.0
        %316 = vmatpush2.msra.mxu0 0.0
        %317 = vmatprep.subr.mxu0 0.0
        %318 = vmatpush2.msra.mxu0 0.0
        %319 = vmatprep.subr.mxu0 0.0
        %320 = vmatpush2.msra.mxu0 0.0
        %321 = vmatprep.subr.mxu0 0.0
        %322 = vmatpush2.msra.mxu0 0.0
        %323 = vmatprep.subr.mxu0 0.0
        %324 = vmatpush2.msra.mxu0 0.0
        %325 = vmatprep.subr.mxu0 0.0
        %326 = vmatpush2.msra.mxu0 0.0
        %327 = vmatprep.subr.mxu0 0.0
        %328 = vmatpush2.msra.mxu0 0.0
        %329 = vmatprep.subr.mxu0 0.0
        %330 = vmatpush2.msra.mxu0 0.0
        %331 = vmatprep.subr.mxu0 0.0
        %332 = vmatpush2.msra.mxu0 0.0
        %333 = vmatprep.subr.mxu0 0.0
        %334 = vmatpush2.msra.mxu0 0.0
        %335 = vmatprep.subr.mxu0 0.0
        %336 = vmatpush2.msra.mxu0 0.0
        %337 = vmatprep.subr.mxu0 0.0
        %338 = vmatpush2.msra.mxu0 0.0
        %339 = vmatprep.subr.mxu0 0.0
        %340 = vmatpush2.msra.mxu0 0.0
        %341 = vmatprep.mubr.f32.mxu0 0.0
        %342 = vmatmul.mubr.f32.gmra.mxu0 %v269
        %v343 = vpop.f32.mrf.mxu0
        %v344 = vadd.f32 %v265, %v343
        %v345 = vpop.f32.mrf.mxu0
        %v346 = vadd.f32 %v265, %v345
        %347 = vdwg.mxu0
        %v348 = vmul.f32 %v344, 0.5
        %v349 = vmul.f32 %v346, 0.5
        %v350 = vmul.f32 %v344, 0.70710677
        %v351 = vmul.f32 %v346, 0.70710677
        %v352 = verf.f32.pop %v350
        %v353 = verf.f32.pop %v351
        %v354 = vadd.f32 %v352, 1.0
        %v355 = vadd.f32 %v353, 1.0
        %v356 = vmul.f32 %v348, %v354
        %v357 = vmul.f32 %v349, %v355
        %v358 = vlaneseq
        %v359 = vand.u32 %v358, 127
        %vm360 = vcmp.lt.s32.totalorder %v359, 7
        %s361 = scalar_lea.vmem %s238, 8
        %v362 = vld [vmem:[%s361] sm:$0xff]
        %s363 = scalar_lea.vmem %s238, 16
        %v364 = vld [vmem:[%s363] sm:$0xff]
        %v365 = vsel %vm360, 1, 0
        %vm366 = vcmp.eq.s32.totalorder %v365, 1
        %v367 = vsel %vm366, %v356, 0.0
        %368 = vadd.xlane.f32.xlu0 %v367
        %v369 = vpop.xlane.xlu0 %368
        %v370 = vmul.f32 %v369, 0.14285715
        %v371 = vmul.f32 %v367, %v367
        %372 = vadd.xlane.f32.xlu0 %v371
        %v373 = vpop.xlane.xlu0 %372
        %v374 = vmul.f32 %v373, 0.14285715
        %v375 = vmul.f32 %v370, %v370
        %v376 = vsub.f32 %v374, %v375
        %v377 = vmax.f32 %v376, 0.0
        %v378 = vsub.f32 %v356, %v370
        %v379 = vadd.f32 %v377, 1e-05
        %v380 = vrsqrt.pop %v379
        %v381 = vmul.f32 %v378, %v380
        %383 = vset.pattern.permute.xlu0 0
        %384 = vperm.xlu0 %383, %v362
        %v385 = vpop.permute.xlu0 %384
        %v387 = vmul.f32 %v385, %v381
        %389 = vset.pattern.permute.xlu0 0
        %390 = vperm.xlu0 %389, %v364
        %v391 = vpop.permute.xlu0 %390
        %v393 = vadd.f32 %v387, %v391
        %394 = vst [vmem:[%s229] sm:$0xff] %v393
        %v395 = vsel %vm366, %v357, 0.0
        %396 = vadd.xlane.f32.xlu0 %v395
        %v397 = vpop.xlane.xlu0 %396
        %v398 = vmul.f32 %v397, 0.14285715
        %v399 = vmul.f32 %v395, %v395
        %400 = vadd.xlane.f32.xlu0 %v399
        %v401 = vpop.xlane.xlu0 %400
        %v402 = vmul.f32 %v401, 0.14285715
        %v403 = vmul.f32 %v398, %v398
        %v404 = vsub.f32 %v402, %v403
        %v405 = vmax.f32 %v404, 0.0
        %v406 = vsub.f32 %v357, %v398
        %v407 = vadd.f32 %v405, 1e-05
        %v408 = vrsqrt.pop %v407
        %v409 = vmul.f32 %v406, %v408
        %v410 = vmul.f32 %v385, %v409
        %v411 = vadd.f32 %v410, %v391
        %s412 = scalar_lea.vmem %s229, 8 [#allocation5]
        %413 = vst [vmem:[%s412] sm:$0xff] %v411
        %s414 = sand.u32 %s120, 1
        %s415 = scalar_lea.sflag [#allocation4], %s414
        %s416 = sand.u32 %s120, 1
        %s417 = smul.addr %s416, 16
        %s418 = scalar_lea.vmem [#allocation5], %s417
        // Predicated region
        $region37: #{tpu_custom_call.1} parent=31 // pred_check
          %p419 = pneg %p130
        $region38: #{tpu_custom_call.1} parent=31 // pred_check_branch
          %421 = sbr.rel (%p419) target = $region40
        $region39: #{tpu_custom_call.1} parent=31 // pred_region
          %s422 = smul.u32 2, %s24
          %s424 = ssub.s32 256, 256
          %425 = vsyncadd %s415, %s424
          %s426 = sadd.s32 %s25, %s422
          %s427 = smul.addr %s426, 128
          %s428 = scalar_lea.hbm %s3, %s427
          %s429 = sshll.u32 %s418, 4
          %s430 = int_to_ptr.vmem [resolvable:$true] %s429
          %435 = dma.vmem_to_hbm [thread:$0]  %s430, 256, %s428, %s415, 128, 128, 8
        $region40: #{tpu_custom_call.1} parent=31 // pred_fallthru
          _
      $region32: #{tpu_custom_call.1} parent=5 // pred_fallthru
        _
      %p436 = scmp.le.s32.totalorder 2, %s15
      // Predicated region
      $region41: #{tpu_custom_call.1} parent=5 // pred_check
        %p437 = pneg %p436
      $region42: #{tpu_custom_call.1} parent=5 // pred_check_branch
        %439 = sbr.rel (%p437) target = $region44
      $region43: #{tpu_custom_call.1} parent=5 // pred_region
        %s440 = ssub.s32 %s15, 2
        // Predicated region
        $region45: #{tpu_custom_call.1} parent=43 // pred_check
          %p441 = pneg %p136
        $region46: #{tpu_custom_call.1} parent=43 // pred_check_branch
          %443 = sbr.rel (%p441) target = $region48
        $region47: #{tpu_custom_call.1} parent=43 // pred_region
          %s444 = sand.u32 %s121, 1
          %s445 = scalar_lea.sflag [#allocation4], %s444
          %s446 = sand.u32 %s121, 1
          %s447 = smul.addr %s446, 16
          %s448 = scalar_lea.vmem [#allocation5], %s447
          %449 = dma.done %s445, 256
        $region48: #{tpu_custom_call.1} parent=43 // pred_fallthru
          _
      $region44: #{tpu_custom_call.1} parent=5 // pred_fallthru
        _
    $region6: #{tpu_custom_call.1} parent=1 // loop_footer
      %s19 = sadd.s32 1, %s15
    $region7: #{tpu_custom_call.1} parent=1 // loop_footer_branch
      %14 = sbr.rel target = $region3
    $region8: #{tpu_custom_call.1} parent=1 // loop_exit
      _
    %450 = vsyncpa [#allocation3], 1
    %s451 = scalar_lea.sflag [#allocation3], 1
    %452 = vsyncpa %s451, 1
    %453 = vsyncpa [#allocation4], 1
    %s454 = scalar_lea.sflag [#allocation4], 1
    %455 = vsyncpa %s454, 1

</llo_original>
